<compile_context>
chip_gen: v7x
topology: tpu7x:2x2x1
jax: 0.10.0
libtpu: 0.0.40
codegen_flags: <defaults>
</compile_context>

<pallas_src>
import functools

import jax
import jax.numpy as jnp
from jax import lax
from jax.experimental import pallas as pl
from jax.experimental.pallas import tpu as pltpu


_MASK_W2_HALF = 1e30   # 0.5*|w|^2 for padded codebook rows -> softmax prob == 0


def _round_up(a: int, b: int) -> int:
    return ((a + b - 1) // b) * b


def _vmem_budgets():
    """Generation-aware scoped-VMEM request / tile budget / max row tile."""
    try:
        cap_bytes = int(pltpu.get_tpu_info().vmem_capacity_bytes)
    except Exception:
        cap_bytes = 0
    if cap_bytes <= 0:
        cap_bytes = 64 * 1024 * 1024              # conservative (v7x per-TC)
    limit = max(32 * 1024 * 1024,
                min((cap_bytes * 3) // 4, 100 * 1024 * 1024))
    tile_budget = (limit * 3) // 4                # headroom for compiler temps
    tn_max = 1024 if limit >= 64 * 1024 * 1024 else 512
    return limit, tile_budget, tn_max


def _softvq_kernel(x_ref, w_ref, w2h_ref, qdist_ref, out_ref, *, two_scale: float):
    """One row-tile: distances -> temperature softmax -> soft quantization."""
    x = x_ref[...]                       # (tn, Dp), native dtype (bf16 stays bf16)
    w = w_ref[...]                       # (Qp, Dp), native dtype

    # x . w^T without materializing a transposed codebook: contract last dims.
    xw = lax.dot_general(
        x, w,
        dimension_numbers=(((1,), (1,)), ((), ())),
        preferred_element_type=jnp.float32)            # (tn, Qp) f32

    # logits = (x.w - 0.5*|w|^2) * 2/(D*T); the |x|^2 term cancels in softmax.
    logits = (xw - w2h_ref[...]) * jnp.float32(two_scale)

    # Numerically stable softmax over the (padded) codebook axis.
    m = jnp.max(logits, axis=-1, keepdims=True)
    e = jnp.exp(logits - m)
    p = e * pl.reciprocal(jnp.sum(e, axis=-1, keepdims=True), approx=False)

    qdist_ref[...] = p.astype(qdist_ref.dtype)
    out_ref[...] = jnp.dot(
        p.astype(w.dtype), w,
        preferred_element_type=jnp.float32).astype(out_ref.dtype)


def _choose_row_tile(n, d_pad, q_pad, x_bytes, out_bytes, tn_max,
                     tile_budget, row_align):
    """Largest row tile whose working set fits the VMEM tile budget."""
    # Codebook + 0.5*|w|^2 are grid-invariant and single-buffered.
    const_bytes = q_pad * d_pad * x_bytes + q_pad * 4
    per_row = (2 * d_pad * x_bytes       # double-buffered x row tile
               + 2 * q_pad * 4           # double-buffered q_dist tile (f32 worst case)
               + 2 * d_pad * out_bytes   # double-buffered quantized tile
               + 4 * q_pad * 4)          # f32 temps: xw / logits / exp / p
    cap = max(row_align, (tile_budget - const_bytes) // per_row)
    if cap >= 128:
        cap = (cap // 128) * 128
    else:
        cap = (cap // row_align) * row_align
    cap = int(max(row_align, min(cap, tn_max)))
    if n > cap:
        return cap                       # >= 2 grid steps automatically
    tn = _round_up(n, row_align)
    # v7x megacore: keep >= 2 grid steps for large single-tile inputs so the
    # "parallel" row axis can be sharded across both TensorCores.
    if n >= 256:
        tn = min(tn, _round_up(-(-n // 2), row_align))
    return max(row_align, tn)


def soft_vector_quantizing(x, weight, temperature=1.0, *,
                           tn_max=None, q_dist_dtype=jnp.float32):
    """Pallas implementation of SoftVectorQuantizing.forward.

    Args:
      x: array of shape (..., quantizing_dim).
      weight: codebook, shape (num_quantizing, quantizing_dim).
      temperature: softmax temperature (static python float).
      tn_max: optional upper bound on the row tile (default: generation-aware).
      q_dist_dtype: dtype of the returned distribution (default float32).

    Returns:
      (quantized, q_distribution) with shapes
        quantized:      x.shape                          (dtype of x)
        q_distribution: (*x.shape[:-1], num_quantizing)  (q_dist_dtype)
    """
    input_shape = x.shape
    q_num, q_dim = weight.shape
    assert input_shape[-1] == q_dim

    h = x.reshape(-1, q_dim)
    n = h.shape[0]

    x_bytes = jnp.dtype(x.dtype).itemsize
    out_bytes = x_bytes
    qd_bytes = jnp.dtype(q_dist_dtype).itemsize
    row_align = max(8, 32 // max(1, x_bytes))    # 8 f32 / 16 bf16 / 32 int8

    # Lane-dense padding of the codebook dims (no-op when already 128-multiples).
    d_pad = _round_up(q_dim, 128)
    q_pad = _round_up(q_num, 128)

    vmem_limit, tile_budget, default_tn_max = _vmem_budgets()
    if tn_max is None:
        tn_max = default_tn_max
    tn = _choose_row_tile(n, d_pad, q_pad, x_bytes, out_bytes, tn_max,
                          tile_budget, row_align)

    # Only the D (lane) axis of x ever needs explicit zero padding: garbage
    # lanes would otherwise poison the contraction.  Ragged row tiles and
    # ragged output columns are handled by Pallas' masked boundary stores, so
    # there is no row padding and no post-call output slicing (saves full-array
    # HBM round trips around this mem-bound kernel).
    if d_pad != q_dim:
        h = jnp.pad(h, ((0, 0), (0, d_pad - q_dim)))

    # Codebook: cast to the activation dtype (bf16 matmuls stay bf16), zero-pad.
    w = weight.astype(x.dtype)
    wf = w.astype(jnp.float32)
    w2_half = 0.5 * jnp.sum(wf * wf, axis=-1)[None, :]          # (1, Q) f32
    if q_pad != q_num or d_pad != q_dim:
        w = jnp.pad(w, ((0, q_pad - q_num), (0, d_pad - q_dim)))
    if q_pad != q_num:
        # Huge 0.5*|w|^2 on padded rows -> finite very-negative logit -> p == 0.
        w2_half = jnp.pad(w2_half, ((0, 0), (0, q_pad - q_num)),
                          constant_values=_MASK_W2_HALF)

    # logits = (x.w - 0.5*|w|^2) * 2 / (D * temperature)
    two_scale = 2.0 / (float(q_dim) * float(temperature))
    kernel = functools.partial(_softvq_kernel, two_scale=two_scale)

    grid = (pl.cdiv(n, tn),)

    cost = pl.CostEstimate(
        flops=4 * n * q_pad * d_pad,              # two matmuls
        transcendentals=n * q_pad,                # exp
        bytes_accessed=(n * d_pad * x_bytes + q_pad * d_pad * x_bytes
                        + n * q_num * qd_bytes + n * q_dim * out_bytes),
    )

    q_distribution, quantized = pl.pallas_call(
        kernel,
        out_shape=(
            jax.ShapeDtypeStruct((n, q_num), q_dist_dtype),      # q_distribution
            jax.ShapeDtypeStruct((n, q_dim), x.dtype),           # quantized
        ),
        grid_spec=pltpu.PrefetchScalarGridSpec(
            num_scalar_prefetch=0,
            grid=grid,
            in_specs=[
                pl.BlockSpec((tn, d_pad), lambda i: (i, 0)),     # x row tile
                pl.BlockSpec((q_pad, d_pad), lambda i: (0, 0),   # full codebook,
                             pipeline_mode=pl.Buffered(1)),      #   single buffer
                pl.BlockSpec((1, q_pad), lambda i: (0, 0),       # 0.5*|w|^2,
                             pipeline_mode=pl.Buffered(1)),      #   single buffer
            ],
            out_specs=[
                pl.BlockSpec((tn, q_pad), lambda i: (i, 0)),
                pl.BlockSpec((tn, d_pad), lambda i: (i, 0)),
            ],
        ),
        compiler_params=pltpu.CompilerParams(
            dimension_semantics=("parallel",),
            vmem_limit_bytes=vmem_limit,
        ),
        cost_estimate=cost,
    )(h, w, w2_half)

    return (quantized.reshape(input_shape),
            q_distribution.reshape((*input_shape[:-1], q_num)))


def _reference(x, weight, temperature):
    """Plain-JAX reference matching the PyTorch module exactly."""
    input_shape = x.shape
    q_num, q_dim = weight.shape
    h = x.reshape(-1, q_dim)
    delta = weight[None, :, :] - h[:, None, :]            # (N, Q, D)
    distance = -jnp.mean(delta * delta, axis=-1)          # (N, Q)
    q_dist = jax.nn.softmax(distance / temperature, axis=-1)
    quant = q_dist @ weight
    return (quant.reshape(input_shape),
            q_dist.reshape((*input_shape[:-1], q_num)))


if __name__ == "__main__":
    # Module hyperparameters (small, deterministic).
    num_quantizing = 64     # codebook size Q
    quantizing_dim = 32     # vector dim D
    temperature = 0.7

    key = jax.random.PRNGKey(0)
    k_w, k_x = jax.random.split(key)

    # CodeBook weight: normal(mean=0, std=1), as in nn.init.normal_.
    weight = jax.random.normal(k_w, (num_quantizing, quantizing_dim),
                               dtype=jnp.float32)

    # Example input: (batch=2, seq=8, quantizing_dim=32) -> last dim must equal D.
    x = jax.random.normal(k_x, (2, 8, quantizing_dim), dtype=jnp.float32)

    quantized, q_distribution = jax.jit(
        lambda xx, ww: soft_vector_quantizing(xx, ww, temperature))(x, weight)
    jax.block_until_ready((quantized, q_distribution))

    # Sanity check against the plain-JAX reference.
    ref_q, ref_dist = _reference(x, weight, temperature)
    assert quantized.shape == x.shape
    assert q_distribution.shape == (2, 8, num_quantizing)
    assert quantized.dtype == x.dtype
    assert q_distribution.dtype == jnp.float32
    assert jnp.allclose(quantized, ref_q, atol=1e-4, rtol=1e-4)
    assert jnp.allclose(q_distribution, ref_dist, atol=2e-5, rtol=2e-4)

    print("KERNEL_OK")
</pallas_src>

<mosaic_0001>
module attributes {stable_mosaic.version = 11 : i64} {
  func.func @_softvq_kernel(%arg0: i32, %arg1: memref<16x128xf32, #tpu.memory_space<vmem>>, %arg2: memref<128x128xf32, #tpu.memory_space<vmem>>, %arg3: memref<1x128xf32, #tpu.memory_space<vmem>>, %arg4: memref<16x128xf32, #tpu.memory_space<vmem>>, %arg5: memref<16x128xf32, #tpu.memory_space<vmem>>) attributes {dimension_semantics = [#tpu.dimension_semantics<parallel>], iteration_bounds = array<i64: 1>, scalar_prefetch = 0 : i64, scratch_operands = 0 : i64, tpu.core_type = #tpu.core_type<tc>, window_params = [{transform_indices = @transform_0, window_bounds = array<i64: 16, 128>}, {pipeline_mode = #tpu.pipeline_mode<synchronous>, transform_indices = @transform_1, window_bounds = array<i64: 128, 128>}, {pipeline_mode = #tpu.pipeline_mode<synchronous>, transform_indices = @transform_2, window_bounds = array<i64: 1, 128>}, {transform_indices = @transform_3, window_bounds = array<i64: 16, 128>}, {transform_indices = @transform_4, window_bounds = array<i64: 16, 128>}]} {
    %c0 = arith.constant 0 : index
    %c0_0 = arith.constant 0 : index
    %0 = vector.load %arg1[%c0, %c0_0] : memref<16x128xf32, #tpu.memory_space<vmem>>, vector<16x128xf32>
    %c0_1 = arith.constant 0 : index
    %c0_2 = arith.constant 0 : index
    %1 = vector.load %arg2[%c0_1, %c0_2] : memref<128x128xf32, #tpu.memory_space<vmem>>, vector<128x128xf32>
    %cst = arith.constant dense<0.000000e+00> : vector<16x128xf32>
    %2 = tpu.matmul %0, %1, %cst {dimension_numbers = #tpu.dot_dimension_numbers<[1], [1], [0], [0], [0, 0, 1, 0], [], []>} : vector<16x128xf32>, vector<128x128xf32>, vector<16x128xf32> -> vector<16x128xf32>
    %c0_3 = arith.constant 0 : index
    %c0_4 = arith.constant 0 : index
    %3 = vector.load %arg3[%c0_3, %c0_4] : memref<1x128xf32, #tpu.memory_space<vmem>>, vector<1x128xf32>
    %4 = vector.broadcast %3 : vector<1x128xf32> to vector<16x128xf32>
    %5 = arith.subf %2, %4 : vector<16x128xf32>
    %cst_5 = arith.constant 0.0892857164 : f32
    %6 = vector.broadcast %cst_5 : f32 to vector<16x128xf32>
    %7 = arith.mulf %5, %6 : vector<16x128xf32>
    %cst_6 = arith.constant dense<0xFF800000> : vector<16xf32>
    %8 = vector.multi_reduction <maximumf>, %7, %cst_6 [1] : vector<16x128xf32> to vector<16xf32>
    %9 = vector.shape_cast %8 : vector<16xf32> to vector<16x1xf32>
    %10 = vector.broadcast %9 : vector<16x1xf32> to vector<16x128xf32>
    %11 = arith.subf %7, %10 : vector<16x128xf32>
    %12 = math.exp %11 : vector<16x128xf32>
    %cst_7 = arith.constant dense<0.000000e+00> : vector<16xf32>
    %13 = vector.multi_reduction <add>, %12, %cst_7 [1] : vector<16x128xf32> to vector<16xf32>
    %14 = vector.shape_cast %13 : vector<16xf32> to vector<16x1xf32>
    %15 = tpu.reciprocal %14 : vector<16x1xf32> -> vector<16x1xf32>
    %16 = vector.broadcast %15 : vector<16x1xf32> to vector<16x128xf32>
    %17 = arith.mulf %12, %16 : vector<16x128xf32>
    %c0_8 = arith.constant 0 : index
    %c0_9 = arith.constant 0 : index
    %18 = vector.load %arg4[%c0_8, %c0_9] : memref<16x128xf32, #tpu.memory_space<vmem>>, vector<16x128xf32>
    tpu.vector_store %arg4[%c0_8, %c0_9], %17 {strides = array<i32>} : memref<16x128xf32, #tpu.memory_space<vmem>>, vector<16x128xf32>,
    %cst_10 = arith.constant dense<0.000000e+00> : vector<16x128xf32>
    %19 = tpu.matmul %17, %1, %cst_10 {dimension_numbers = #tpu.dot_dimension_numbers<[1], [0], [0], [1], [0, 0, 1, 1], [], []>} : vector<16x128xf32>, vector<128x128xf32>, vector<16x128xf32> -> vector<16x128xf32>
    %c0_11 = arith.constant 0 : index
    %c0_12 = arith.constant 0 : index
    %20 = vector.load %arg5[%c0_11, %c0_12] : memref<16x128xf32, #tpu.memory_space<vmem>>, vector<16x128xf32>
    tpu.vector_store %arg5[%c0_11, %c0_12], %19 {strides = array<i32>} : memref<16x128xf32, #tpu.memory_space<vmem>>, vector<16x128xf32>,
    return
  }
  func.func @transform_0(%arg0: i32) -> (i32, i32) {
    %c0_i32 = arith.constant 0 : i32
    %c0_i32_0 = arith.constant 0 : i32
    return %arg0, %c0_i32 : i32, i32
  }
  func.func @transform_1(%arg0: i32) -> (i32, i32) {
    %c0_i32 = arith.constant 0 : i32
    %c0_i32_0 = arith.constant 0 : i32
    %c0_i32_1 = arith.constant 0 : i32
    return %c0_i32, %c0_i32_0 : i32, i32
  }
  func.func @transform_2(%arg0: i32) -> (i32, i32) {
    %c0_i32 = arith.constant 0 : i32
    %c0_i32_0 = arith.constant 0 : i32
    %c0_i32_1 = arith.constant 0 : i32
    return %c0_i32, %c0_i32_0 : i32, i32
  }
  func.func @transform_3(%arg0: i32) -> (i32, i32) {
    %c0_i32 = arith.constant 0 : i32
    %c0_i32_0 = arith.constant 0 : i32
    return %arg0, %c0_i32 : i32, i32
  }
  func.func @transform_4(%arg0: i32) -> (i32, i32) {
    %c0_i32 = arith.constant 0 : i32
    %c0_i32_0 = arith.constant 0 : i32
    return %arg0, %c0_i32 : i32, i32
  }
}

</mosaic_0001>

<llo_original>
// kernel: _lambda_.1
$region0: #{_lambda_.1}
  #allocation0 [shape = 'u32[]', space=smem, size = 0x4, offset = 0x4, fixed_abs, tag = 'smem constant byte address 0x4 - core index']
  #allocation1 [shape = 'u32[144,128]{1,0:T(1,128)}', space=vmem, size = 0x12000, scoped, tag = 'internal scratch']
  %s0 = inlined_call_operand.vmem [shape: f32[16,128], index: 0, kind: input, shape index: {}]
  %s1 = inlined_call_operand.vmem [shape: f32[128,128], index: 1, kind: input, shape index: {}]
  %s2 = inlined_call_operand.vmem [shape: f32[1,128], index: 2, kind: input, shape index: {}]
  %s3 = inlined_call_operand.hbm [shape: f32[16,64], index: 3, kind: output, shape index: {0}]
  %s4 = inlined_call_operand.hbm [shape: f32[16,32], index: 4, kind: output, shape index: {1}]
  %5 = xla_tuple %s3, %s4
  %s6 = sld [smem:[#allocation0]]
  $region30: #{_lambda_.1} parent=0
    _
  %s8 = ssub.s32 1, %s6
  %s9 = scalar_select 0, %s8, %s6
  $region1: #{_lambda_.1} parent=0
    #allocation2 [shape = 'u8[8192]{0}', space=vmem, size = 0x2000, scoped, tag = 'output window, operand 0, single buffered']
    #allocation3 [shape = 's32[1]{0}', space=sflag, size = 0x4, scoped, tag = 'scoped memory for _lambda_.1']
    #allocation4 [shape = 'u8[8192]{0}', space=vmem, size = 0x2000, scoped, tag = 'output window, operand 1, single buffered']
    #allocation5 [shape = 's32[1]{0}', space=sflag, size = 0x4, scoped, tag = 'scoped memory for _lambda_.1']
    %10 = vsyncpa [#allocation3], 0
    %11 = vsyncpa [#allocation5], 0
    // Predicated region
    $region2: #{_lambda_.1} parent=1 // pred_check
      _
    $region3: #{_lambda_.1} parent=1 // pred_check_branch
      %13 = sbr.rel (0) target = $region5
    $region4: #{_lambda_.1} parent=1 // pred_region
      _
    $region5: #{_lambda_.1} parent=1 // pred_fallthru
      _
    // Predicated region
    $region6: #{_lambda_.1} parent=1 // pred_check
      _
    $region7: #{_lambda_.1} parent=1 // pred_check_branch
      %15 = sbr.rel (0) target = $region9
    $region8: #{_lambda_.1} parent=1 // pred_region
      _
    $region9: #{_lambda_.1} parent=1 // pred_fallthru
      _
    // Predicated region
    $region10: #{_lambda_.1} parent=1 // pred_check
      _
    $region11: #{_lambda_.1} parent=1 // pred_check_branch
      %17 = sbr.rel (0) target = $region13
    $region12: #{_lambda_.1} parent=1 // pred_region
      _
    $region13: #{_lambda_.1} parent=1 // pred_fallthru
      _
    %v18 = vld [vmem:[%s0] sm:$0xff]
    %v19 = vld [vmem:[%s0 + $0x8] sm:$0xff]
    %v20 = vld [vmem:[%s1] sm:$0xff]
    %v21 = vld [vmem:[%s1 + $0x8] sm:$0xff]
    %v22 = vld [vmem:[%s1 + $0x10] sm:$0xff]
    %v23 = vld [vmem:[%s1 + $0x18] sm:$0xff]
    %v24 = vld [vmem:[%s1 + $0x20] sm:$0xff]
    %v25 = vld [vmem:[%s1 + $0x28] sm:$0xff]
    %v26 = vld [vmem:[%s1 + $0x30] sm:$0xff]
    %v27 = vld [vmem:[%s1 + $0x38] sm:$0xff]
    %v28 = vld [vmem:[%s1 + $0x40] sm:$0xff]
    %v29 = vld [vmem:[%s1 + $0x48] sm:$0xff]
    %v30 = vld [vmem:[%s1 + $0x50] sm:$0xff]
    %v31 = vld [vmem:[%s1 + $0x58] sm:$0xff]
    %v32 = vld [vmem:[%s1 + $0x60] sm:$0xff]
    %v33 = vld [vmem:[%s1 + $0x68] sm:$0xff]
    %v34 = vld [vmem:[%s1 + $0x70] sm:$0xff]
    %v35 = vld [vmem:[%s1 + $0x78] sm:$0xff]
    %36 = vmatprep.subr.mxu0 0.0
    %37 = vmatpush1.xpose.msra.mxu0 %v20
    %38 = vmatprep.subr.mxu0 0.0
    %39 = vmatpush1.xpose.msra.mxu0 %v21
    %40 = vmatprep.subr.mxu0 0.0
    %41 = vmatpush1.xpose.msra.mxu0 %v22
    %42 = vmatprep.subr.mxu0 0.0
    %43 = vmatpush1.xpose.msra.mxu0 %v23
    %44 = vmatprep.subr.mxu0 0.0
    %45 = vmatpush1.xpose.msra.mxu0 %v24
    %46 = vmatprep.subr.mxu0 0.0
    %47 = vmatpush1.xpose.msra.mxu0 %v25
    %48 = vmatprep.subr.mxu0 0.0
    %49 = vmatpush1.xpose.msra.mxu0 %v26
    %50 = vmatprep.subr.mxu0 0.0
    %51 = vmatpush1.xpose.msra.mxu0 %v27
    %52 = vmatprep.subr.mxu0 0.0
    %53 = vmatpush1.xpose.msra.mxu0 %v28
    %54 = vmatprep.subr.mxu0 0.0
    %55 = vmatpush1.xpose.msra.mxu0 %v29
    %56 = vmatprep.subr.mxu0 0.0
    %57 = vmatpush1.xpose.msra.mxu0 %v30
    %58 = vmatprep.subr.mxu0 0.0
    %59 = vmatpush1.xpose.msra.mxu0 %v31
    %60 = vmatprep.subr.mxu0 0.0
    %61 = vmatpush1.xpose.msra.mxu0 %v32
    %62 = vmatprep.subr.mxu0 0.0
    %63 = vmatpush1.xpose.msra.mxu0 %v33
    %64 = vmatprep.subr.mxu0 0.0
    %65 = vmatpush1.xpose.msra.mxu0 %v34
    %66 = vmatprep.subr.mxu0 0.0
    %67 = vmatpush1.xpose.msra.mxu0 %v35
    %68 = vmatprep.subr.mxu0 0.0
    %69 = vmatpush1.xpose.msra.mxu0 0.0
    %70 = vmatprep.subr.mxu0 0.0
    %71 = vmatpush1.xpose.msra.mxu0 0.0
    %72 = vmatprep.subr.mxu0 0.0
    %73 = vmatpush1.xpose.msra.mxu0 0.0
    %74 = vmatprep.subr.mxu0 0.0
    %75 = vmatpush1.xpose.msra.mxu0 0.0
    %76 = vmatprep.subr.mxu0 0.0
    %77 = vmatpush1.xpose.msra.mxu0 0.0
    %78 = vmatprep.subr.mxu0 0.0
    %79 = vmatpush1.xpose.msra.mxu0 0.0
    %80 = vmatprep.subr.mxu0 0.0
    %81 = vmatpush1.xpose.msra.mxu0 0.0
    %82 = vmatprep.subr.mxu0 0.0
    %83 = vmatpush1.xpose.msra.mxu0 0.0
    %84 = vmatprep.subr.mxu0 0.0
    %85 = vmatpush1.xpose.msra.mxu0 0.0
    %86 = vmatprep.subr.mxu0 0.0
    %87 = vmatpush1.xpose.msra.mxu0 0.0
    %88 = vmatprep.subr.mxu0 0.0
    %89 = vmatpush1.xpose.msra.mxu0 0.0
    %90 = vmatprep.subr.mxu0 0.0
    %91 = vmatpush1.xpose.msra.mxu0 0.0
    %92 = vmatprep.subr.mxu0 0.0
    %93 = vmatpush1.xpose.msra.mxu0 0.0
    %94 = vmatprep.subr.mxu0 0.0
    %95 = vmatpush1.xpose.msra.mxu0 0.0
    %96 = vmatprep.subr.mxu0 0.0
    %97 = vmatpush1.xpose.msra.mxu0 0.0
    %98 = vmatprep.subr.mxu0 0.0
    %99 = vmatpush1.xpose.msra.mxu0 0.0
    %100 = vmatprep.mubr.f32.mxu0 0.0
    %101 = vmatmul.mubr.f32.gmra.mrb[0].mxu0 %v18
    %v102 = vpop.f32.mrb[0].mxu0
    %v103 = vadd.f32 0.0, %v102
    %v104 = vpop.f32.mrb[0].mxu0
    %105 = vmatprep.mubr.f32.mxu0 0.0
    %106 = vmatmul.mubr.f32.gmra.mrb[0].mxu0 %v19
    %v107 = vpop.f32.mrb[0].mxu0
    %v108 = vadd.f32 0.0, %v107
    %v109 = vpop.f32.mrb[0].mxu0
    %110 = vdwg.mxu0
    %v111 = vld [vmem:[%s2] sm:$0x1]
    %v113 = vlaneseq
    %v114 = vshrl.u32 %v113, 7
    %v115 = vsub.s32 0, %v114
    %v116 = vrot.slane %v111, %v115
    %v118 = vsub.f32 %v103, %v116
    %v119 = vsub.f32 %v108, %v116
    %v120 = vmul.f32 %v118, 0.08928572
    %v121 = vmul.f32 %v119, 0.08928572
    %122 = vmax.xlane.f32.xlu0 %v120
    %v123 = vpop.xlane.xlu0 %122
    %124 = vmax.xlane.f32.xlu0 %v121
    %v125 = vpop.xlane.xlu0 %124
    %v126 = vsub.f32 %v120, %v123
    %v127 = vsub.f32 %v121, %v125
    %v128 = vmul.f32 %v126, 1.442695
    %v129 = vpow.pop %v128
    %v130 = vmul.f32 %v127, 1.442695
    %v131 = vpow.pop %v130
    %132 = vadd.xlane.f32.xlu0 %v129
    %v133 = vpop.xlane.xlu0 %132
    %134 = vadd.xlane.f32.xlu0 %v131
    %v135 = vpop.xlane.xlu0 %134
    %v136 = vrcp.pop %v133
    %v137 = vrcp.pop %v135
    %v138 = vmul.f32 %v129, %v136
    %v139 = vmul.f32 %v131, %v137
    %140 = vst [vmem:[#allocation2] sm:$0xff] %v138
    %141 = vst [vmem:[#allocation2 + $0x8] sm:$0xff] %v139
    %142 = vmatprep.subr.mxu0 0.0
    %143 = vmatpush1.msra.mxu0 %v20
    %144 = vmatprep.subr.mxu0 0.0
    %145 = vmatpush1.msra.mxu0 %v21
    %146 = vmatprep.subr.mxu0 0.0
    %147 = vmatpush1.msra.mxu0 %v22
    %148 = vmatprep.subr.mxu0 0.0
    %149 = vmatpush1.msra.mxu0 %v23
    %150 = vmatprep.subr.mxu0 0.0
    %151 = vmatpush1.msra.mxu0 %v24
    %152 = vmatprep.subr.mxu0 0.0
    %153 = vmatpush1.msra.mxu0 %v25
    %154 = vmatprep.subr.mxu0 0.0
    %155 = vmatpush1.msra.mxu0 %v26
    %156 = vmatprep.subr.mxu0 0.0
    %157 = vmatpush1.msra.mxu0 %v27
    %158 = vmatprep.subr.mxu0 0.0
    %159 = vmatpush1.msra.mxu0 %v28
    %160 = vmatprep.subr.mxu0 0.0
    %161 = vmatpush1.msra.mxu0 %v29
    %162 = vmatprep.subr.mxu0 0.0
    %163 = vmatpush1.msra.mxu0 %v30
    %164 = vmatprep.subr.mxu0 0.0
    %165 = vmatpush1.msra.mxu0 %v31
    %166 = vmatprep.subr.mxu0 0.0
    %167 = vmatpush1.msra.mxu0 %v32
    %168 = vmatprep.subr.mxu0 0.0
    %169 = vmatpush1.msra.mxu0 %v33
    %170 = vmatprep.subr.mxu0 0.0
    %171 = vmatpush1.msra.mxu0 %v34
    %172 = vmatprep.subr.mxu0 0.0
    %173 = vmatpush1.msra.mxu0 %v35
    %174 = vmatprep.subr.mxu0 0.0
    %175 = vmatpush1.msra.mxu0 0.0
    %176 = vmatprep.subr.mxu0 0.0
    %177 = vmatpush1.msra.mxu0 0.0
    %178 = vmatprep.subr.mxu0 0.0
    %179 = vmatpush1.msra.mxu0 0.0
    %180 = vmatprep.subr.mxu0 0.0
    %181 = vmatpush1.msra.mxu0 0.0
    %182 = vmatprep.subr.mxu0 0.0
    %183 = vmatpush1.msra.mxu0 0.0
    %184 = vmatprep.subr.mxu0 0.0
    %185 = vmatpush1.msra.mxu0 0.0
    %186 = vmatprep.subr.mxu0 0.0
    %187 = vmatpush1.msra.mxu0 0.0
    %188 = vmatprep.subr.mxu0 0.0
    %189 = vmatpush1.msra.mxu0 0.0
    %190 = vmatprep.subr.mxu0 0.0
    %191 = vmatpush1.msra.mxu0 0.0
    %192 = vmatprep.subr.mxu0 0.0
    %193 = vmatpush1.msra.mxu0 0.0
    %194 = vmatprep.subr.mxu0 0.0
    %195 = vmatpush1.msra.mxu0 0.0
    %196 = vmatprep.subr.mxu0 0.0
    %197 = vmatpush1.msra.mxu0 0.0
    %198 = vmatprep.subr.mxu0 0.0
    %199 = vmatpush1.msra.mxu0 0.0
    %200 = vmatprep.subr.mxu0 0.0
    %201 = vmatpush1.msra.mxu0 0.0
    %202 = vmatprep.subr.mxu0 0.0
    %203 = vmatpush1.msra.mxu0 0.0
    %204 = vmatprep.subr.mxu0 0.0
    %205 = vmatpush1.msra.mxu0 0.0
    %206 = vmatprep.mubr.f32.mxu0 0.0
    %207 = vmatmul.mubr.f32.gmra.mrb[0].mxu0 %v138
    %v208 = vpop.f32.mrb[0].mxu0
    %v209 = vadd.f32 0.0, %v208
    %v210 = vpop.f32.mrb[0].mxu0
    %211 = vmatprep.mubr.f32.mxu0 0.0
    %212 = vmatmul.mubr.f32.gmra.mrb[0].mxu0 %v139
    %v213 = vpop.f32.mrb[0].mxu0
    %v214 = vadd.f32 0.0, %v213
    %v215 = vpop.f32.mrb[0].mxu0
    %216 = vdwg.mxu0
    %217 = vst [vmem:[#allocation4] sm:$0xff] %v209
    %218 = vst [vmem:[#allocation4 + $0x8] sm:$0xff] %v214
    // Predicated region
    $region14: #{_lambda_.1} parent=1 // pred_check
      _
    $region15: #{_lambda_.1} parent=1 // pred_check_branch
      %220 = sbr.rel (0) target = $region17
    $region16: #{_lambda_.1} parent=1 // pred_region
      %s222 = ssub.s32 256, 256
      %223 = vsyncadd [#allocation3], %s222
      %s224 = sshll.u32 [#allocation2], 4
      %s225 = int_to_ptr.vmem [resolvable:$true] %s224
      %230 = dma.vmem_to_hbm [thread:$0]  %s225, 256, %s3, [#allocation3], 128, 128, 8
    $region17: #{_lambda_.1} parent=1 // pred_fallthru
      _
    // Predicated region
    $region18: #{_lambda_.1} parent=1 // pred_check
      _
    $region19: #{_lambda_.1} parent=1 // pred_check_branch
      %232 = sbr.rel (0) target = $region21
    $region20: #{_lambda_.1} parent=1 // pred_region
      %s234 = ssub.s32 256, 256
      %235 = vsyncadd [#allocation5], %s234
      %s236 = sshll.u32 [#allocation4], 4
      %s237 = int_to_ptr.vmem [resolvable:$true] %s236
      %242 = dma.vmem_to_hbm [thread:$0]  %s237, 256, %s4, [#allocation5], 128, 128, 8
    $region21: #{_lambda_.1} parent=1 // pred_fallthru
      _
    // Predicated region
    $region22: #{_lambda_.1} parent=1 // pred_check
      _
    $region23: #{_lambda_.1} parent=1 // pred_check_branch
      %244 = sbr.rel (0) target = $region25
    $region24: #{_lambda_.1} parent=1 // pred_region
      %245 = dma.done [#allocation3], 256
    $region25: #{_lambda_.1} parent=1 // pred_fallthru
      _
    // Predicated region
    $region26: #{_lambda_.1} parent=1 // pred_check
      _
    $region27: #{_lambda_.1} parent=1 // pred_check_branch
      %247 = sbr.rel (0) target = $region29
    $region28: #{_lambda_.1} parent=1 // pred_region
      %248 = dma.done [#allocation5], 256
    $region29: #{_lambda_.1} parent=1 // pred_fallthru
      _
    %249 = vsyncpa [#allocation3], 1
    %250 = vsyncpa [#allocation5], 1

</llo_original>
